<compile_context>
chip_gen: v7x
topology: tpu7x:2x2x1
jax: 0.10.0
libtpu: 0.0.40
codegen_flags: <defaults>
</compile_context>

<pallas_src>
import jax
import jax.numpy as jnp
from jax import lax
from jax.experimental import pallas as pl
from jax.experimental.pallas import tpu as pltpu

NUM_CLASSES = 6
SMOOTH = 1e-6
GAMMA = 2.0          # focal gamma; kernel hardcodes gamma == 2 (one_m * one_m)
ALPHA = 0.25         # focal alpha
LANES = 128
MAX_SUBLANE_TILE = 512   # rows of 128 pixels per spatial grid step


def _make_kernel(hw, st, num_spatial_blocks, needs_mask):
    def kernel(pred_ref, tgt_ref, inter_ref, card_ref, focal_ref):
        t = pl.program_id(1)

        @pl.when(t == 0)
        def _init():
            inter_ref[...] = jnp.zeros_like(inter_ref)
            card_ref[...] = jnp.zeros_like(card_ref)
            focal_ref[...] = jnp.zeros_like(focal_ref)

        # Native-dtype load (bf16/f32), upcast in-register.
        x = pred_ref[0].astype(jnp.float32)      # (C, St, 128) logits
        tgt = tgt_ref[0, 0]                      # (St, 128) int32 labels

        # Softmax over the class (leading) axis: VALU max/add over C slabs,
        # one reciprocal per pixel broadcast into C multiplies.
        m = jnp.max(x, axis=0, keepdims=True)                 # (1, St, 128)
        e = jnp.exp(x - m)                                    # (C, St, 128)
        s = jnp.sum(e, axis=0, keepdims=True)                 # (1, St, 128)
        p = e * pl.reciprocal(s, approx=False)                # approx=False: 1e-5 tol

        cls = lax.broadcasted_iota(jnp.int32, x.shape, 0)     # class index per slab

        def accumulate(p_for_card, tgt_eff, valid_mask):
            is_true = cls == tgt_eff[None]                    # (C, St, 128) bool
            prod = jnp.where(is_true, p, 0.0)                 # p on true class, else 0
            # Focal term lives only on the true class: p_t = sum_c p_c * onehot_c.
            pt = jnp.sum(prod, axis=0)                        # (St, 128)
            ptc = jnp.clip(pt, SMOOTH, 1.0 - SMOOTH)
            one_m = 1.0 - ptc
            focal_pix = (ALPHA * one_m * one_m) * (-jnp.log(ptc))   # gamma == 2
            if valid_mask is not None:
                focal_pix = jnp.where(valid_mask, focal_pix, 0.0)
            oh_sum = jnp.sum(is_true.astype(jnp.float32), axis=1)   # (C, 128)
            inter_ref[...] += jnp.sum(prod, axis=1)[None]                    # (1,C,128)
            card_ref[...] += (jnp.sum(p_for_card, axis=1) + oh_sum)[None]    # (1,C,128)
            focal_ref[...] += jnp.sum(focal_pix, axis=0, keepdims=True)[None]  # (1,1,128)

        if needs_mask:
            last = num_spatial_blocks - 1

            if num_spatial_blocks > 1:
                @pl.when(t < last)
                def _full_blocks():
                    accumulate(p, tgt, None)

            @pl.when(t == last)
            def _tail_block():
                row = t * st + lax.broadcasted_iota(jnp.int32, (st, LANES), 0)
                lane = lax.broadcasted_iota(jnp.int32, (st, LANES), 1)
                valid = (row * LANES + lane) < hw             # (St, 128) bool
                # Sentinel label on pad pixels -> one-hot is identically zero there;
                # where-selects also kill NaNs from garbage overrun rows.
                tgt_m = jnp.where(valid, tgt, NUM_CLASSES)
                p_card = jnp.where(valid[None], p, 0.0)
                accumulate(p_card, tgt_m, valid)
        else:
            accumulate(p, tgt, None)

    return kernel


def weighted_composite_loss(pred, target, lambda_focal=0.5, lambda_dice=0.5,
                            class_weights=None, max_rows=MAX_SUBLANE_TILE):
    """pred: (N, C, H, W) float logits (f32 or bf16); target: (N, H, W) int labels."""
    N, C, H, W = pred.shape
    HW = H * W
    S = pl.cdiv(HW, LANES)                    # number of 128-lane pixel rows
    if S <= max_rows:
        St, T = S, 1
    else:
        St, T = max_rows, pl.cdiv(S, max_rows)
    pad = S * LANES - HW                      # pad only to the next 128 multiple
    needs_mask = (T * St * LANES) > HW        # last spatial block has pad/overrun

    # Keep pred in its native dtype; the kernel upcasts in-register.
    pred_f = pred.reshape(N, C, HW)
    tgt_f = target.reshape(N, HW).astype(jnp.int32)
    if pad:
        # TODO(synk): for ragged HW this pad rewrites pred once (extra HBM pass);
        # fuse it into the producer or DMA only the tail 128-pixel row separately.
        pred_f = jnp.pad(pred_f, ((0, 0), (0, 0), (0, pad)))
        tgt_f = jnp.pad(tgt_f, ((0, 0), (0, pad)))
    pred_r = pred_f.reshape(N, C, S, LANES)
    tgt_r = tgt_f.reshape(N, 1, S, LANES)

    kernel = _make_kernel(HW, St, T, needs_mask)

    inter_l, card_l, focal_l = pl.pallas_call(
        kernel,
        out_shape=(
            jax.ShapeDtypeStruct((N, C, LANES), jnp.float32),
            jax.ShapeDtypeStruct((N, C, LANES), jnp.float32),
            jax.ShapeDtypeStruct((N, 1, LANES), jnp.float32),
        ),
        grid_spec=pltpu.PrefetchScalarGridSpec(
            num_scalar_prefetch=0,
            grid=(N, T),
            in_specs=[
                pl.BlockSpec((1, C, St, LANES), lambda n, t: (n, 0, t, 0)),
                pl.BlockSpec((1, 1, St, LANES), lambda n, t: (n, 0, t, 0)),
            ],
            out_specs=(
                pl.BlockSpec((1, C, LANES), lambda n, t: (n, 0, 0)),
                pl.BlockSpec((1, C, LANES), lambda n, t: (n, 0, 0)),
                pl.BlockSpec((1, 1, LANES), lambda n, t: (n, 0, 0)),
            ),
        ),
        compiler_params=pltpu.CompilerParams(
            dimension_semantics=("parallel", "arbitrary")),  # batch parallel, spatial reduce
    )(pred_r, tgt_r)

    # Tiny finalize in plain JAX on (N, C) partials.
    inter = jnp.sum(inter_l, axis=-1)            # (N, C)
    card = jnp.sum(card_l, axis=-1)              # (N, C)
    dice = (2.0 * inter + SMOOTH) / (card + SMOOTH)
    dice_loss = 1.0 - jnp.mean(dice)
    focal_loss = jnp.sum(focal_l) / (N * C)      # sum_{n,c,pix} / (N*C)

    if class_weights is not None:
        w = jnp.mean(jnp.asarray(class_weights, jnp.float32))
        focal_loss = focal_loss * w
        dice_loss = dice_loss * w

    # TODO(synk): v7x small-N dual-TensorCore split (extra leading "parallel" grid
    # axis over spatial halves) not implemented; batch axis alone is "parallel".
    # TODO(synk): update_lambdas() is a host-side training schedule helper, not
    # part of the forward pass; keep it in Python if needed.
    return lambda_focal * focal_loss + lambda_dice * dice_loss


def weighted_composite_loss_ref(pred, target, lambda_focal=0.5, lambda_dice=0.5,
                                class_weights=None):
    """Pure-JAX reference mirroring the PyTorch WeightedCompositeLoss."""
    C = pred.shape[1]
    p = jax.nn.softmax(pred.astype(jnp.float32), axis=1)
    oh = jax.nn.one_hot(target, C, axis=1, dtype=jnp.float32)

    inter = jnp.sum(p * oh, axis=(2, 3))
    card = jnp.sum(p + oh, axis=(2, 3))
    dice = (2.0 * inter + SMOOTH) / (card + SMOOTH)
    dice_loss = 1.0 - jnp.mean(dice)

    pc = jnp.clip(p, SMOOTH, 1.0 - SMOOTH)
    focal = ALPHA * (1.0 - pc) ** GAMMA * (-oh * jnp.log(pc))
    focal_loss = jnp.mean(jnp.sum(focal, axis=(2, 3)))

    if class_weights is not None:
        w = jnp.mean(jnp.asarray(class_weights, jnp.float32))
        focal_loss = focal_loss * w
        dice_loss = dice_loss * w
    return lambda_focal * focal_loss + lambda_dice * dice_loss


if __name__ == "__main__":
    key = jax.random.PRNGKey(0)
    keys = jax.random.split(key, 8)

    def check(pred, target, max_rows=MAX_SUBLANE_TILE, class_weights=None,
              atol=1e-5, rtol=1e-5):
        loss = weighted_composite_loss(pred, target, class_weights=class_weights,
                                       max_rows=max_rows)
        jax.block_until_ready(loss)
        ref = weighted_composite_loss_ref(pred, target, class_weights=class_weights)
        assert jnp.allclose(loss, ref, atol=atol, rtol=rtol), (float(loss), float(ref))

    # 1) aligned spatial size (HW % 128 == 0): zero-copy fast path, f32 logits.
    N, C, H, W = 2, NUM_CLASSES, 16, 16
    pred = jax.random.normal(keys[0], (N, C, H, W), dtype=jnp.float32)
    target = jax.random.randint(keys[1], (N, H, W), 0, NUM_CLASSES, dtype=jnp.int32)
    check(pred, target)

    # 2) native bf16 logits (kernel upcasts in-register; halves dominant HBM read).
    check(pred.astype(jnp.bfloat16), target)

    # 3) ragged spatial size (HW % 128 != 0): masked tail block.
    pred_r = jax.random.normal(keys[2], (N, C, 15, 15), dtype=jnp.float32)
    target_r = jax.random.randint(keys[3], (N, 15, 15), 0, NUM_CLASSES, dtype=jnp.int32)
    check(pred_r, target_r)

    # 4) multi-block spatial grid with a partial, masked last block
    #    (small tile override to exercise the T > 1 path at small shapes).
    pred_m = jax.random.normal(keys[4], (N, C, 33, 33), dtype=jnp.float32)
    target_m = jax.random.randint(keys[5], (N, 33, 33), 0, NUM_CLASSES, dtype=jnp.int32)
    check(pred_m, target_m, max_rows=8)

    # 5) class_weights path (scalar-mean semantics, matching the PyTorch module).
    cw = jnp.array([1.0, 2.0, 0.5, 1.5, 1.0, 3.0], dtype=jnp.float32)
    check(pred, target, class_weights=cw)

    print("KERNEL_OK")
</pallas_src>

<mosaic_0001>
module attributes {stable_mosaic.version = 11 : i64} {
  func.func @kernel(%arg0: i32, %arg1: i32, %arg2: memref<1x6x2x128xf32, #tpu.memory_space<vmem>>, %arg3: memref<1x1x2x128xi32, #tpu.memory_space<vmem>>, %arg4: memref<1x6x128xf32, #tpu.memory_space<vmem>>, %arg5: memref<1x6x128xf32, #tpu.memory_space<vmem>>, %arg6: memref<1x1x128xf32, #tpu.memory_space<vmem>>) attributes {dimension_semantics = [#tpu.dimension_semantics<parallel>, #tpu.dimension_semantics<arbitrary>], iteration_bounds = array<i64: 2, 1>, scalar_prefetch = 0 : i64, scratch_operands = 0 : i64, tpu.core_type = #tpu.core_type<tc>, window_params = [{transform_indices = @transform_0, window_bounds = array<i64: 1, 6, 2, 128>}, {transform_indices = @transform_1, window_bounds = array<i64: 1, 1, 2, 128>}, {transform_indices = @transform_2, window_bounds = array<i64: 1, 6, 128>}, {transform_indices = @transform_3, window_bounds = array<i64: 1, 6, 128>}, {transform_indices = @transform_4, window_bounds = array<i64: 1, 1, 128>}]} {
    %c0_i32 = arith.constant 0 : i32
    %0 = arith.cmpi eq, %arg1, %c0_i32 : i32
    %1 = arith.extui %0 : i1 to i32
    %c0_i32_0 = arith.constant 0 : i32
    %2 = arith.cmpi ne, %1, %c0_i32_0 : i32
    scf.if %2 {
      %cst_38 = arith.constant 0.000000e+00 : f32
      %57 = vector.broadcast %cst_38 : f32 to vector<1x6x128xf32>
      %c0_39 = arith.constant 0 : index
      %c0_40 = arith.constant 0 : index
      %c0_41 = arith.constant 0 : index
      %58 = vector.load %arg4[%c0_39, %c0_40, %c0_41] : memref<1x6x128xf32, #tpu.memory_space<vmem>>, vector<1x6x128xf32>
      tpu.vector_store %arg4[%c0_39, %c0_40, %c0_41], %57 {strides = array<i32>} : memref<1x6x128xf32, #tpu.memory_space<vmem>>, vector<1x6x128xf32>,
      %cst_42 = arith.constant 0.000000e+00 : f32
      %59 = vector.broadcast %cst_42 : f32 to vector<1x6x128xf32>
      %c0_43 = arith.constant 0 : index
      %c0_44 = arith.constant 0 : index
      %c0_45 = arith.constant 0 : index
      %60 = vector.load %arg5[%c0_43, %c0_44, %c0_45] : memref<1x6x128xf32, #tpu.memory_space<vmem>>, vector<1x6x128xf32>
      tpu.vector_store %arg5[%c0_43, %c0_44, %c0_45], %59 {strides = array<i32>} : memref<1x6x128xf32, #tpu.memory_space<vmem>>, vector<1x6x128xf32>,
      %cst_46 = arith.constant 0.000000e+00 : f32
      %61 = vector.broadcast %cst_46 : f32 to vector<1x1x128xf32>
      %c0_47 = arith.constant 0 : index
      %c0_48 = arith.constant 0 : index
      %c0_49 = arith.constant 0 : index
      %62 = vector.load %arg6[%c0_47, %c0_48, %c0_49] : memref<1x1x128xf32, #tpu.memory_space<vmem>>, vector<1x1x128xf32>
      tpu.vector_store %arg6[%c0_47, %c0_48, %c0_49], %61 {strides = array<i32>} : memref<1x1x128xf32, #tpu.memory_space<vmem>>, vector<1x1x128xf32>,
    } else {
    }
    %c0 = arith.constant 0 : index
    %c0_1 = arith.constant 0 : index
    %c0_2 = arith.constant 0 : index
    %c0_3 = arith.constant 0 : index
    %3 = vector.load %arg2[%c0, %c0_1, %c0_2, %c0_3] : memref<1x6x2x128xf32, #tpu.memory_space<vmem>>, vector<1x6x2x128xf32>
    %4 = vector.shape_cast %3 : vector<1x6x2x128xf32> to vector<6x2x128xf32>
    %c0_4 = arith.constant 0 : index
    %c0_5 = arith.constant 0 : index
    %c0_6 = arith.constant 0 : index
    %c0_7 = arith.constant 0 : index
    %5 = vector.load %arg3[%c0_4, %c0_5, %c0_6, %c0_7] : memref<1x1x2x128xi32, #tpu.memory_space<vmem>>, vector<1x1x2x128xi32>
    %6 = vector.shape_cast %5 : vector<1x1x2x128xi32> to vector<2x128xi32>
    %cst = arith.constant dense<0xFF800000> : vector<2x128xf32>
    %7 = vector.multi_reduction <maximumf>, %4, %cst [0] : vector<6x2x128xf32> to vector<2x128xf32>
    %8 = vector.shape_cast %7 : vector<2x128xf32> to vector<1x2x128xf32>
    %9 = vector.broadcast %8 : vector<1x2x128xf32> to vector<6x2x128xf32>
    %10 = arith.subf %4, %9 : vector<6x2x128xf32>
    %11 = math.exp %10 : vector<6x2x128xf32>
    %cst_8 = arith.constant dense<0.000000e+00> : vector<2x128xf32>
    %12 = vector.multi_reduction <add>, %11, %cst_8 [0] : vector<6x2x128xf32> to vector<2x128xf32>
    %13 = vector.shape_cast %12 : vector<2x128xf32> to vector<1x2x128xf32>
    %14 = tpu.reciprocal %13 : vector<1x2x128xf32> -> vector<1x2x128xf32>
    %15 = vector.broadcast %14 : vector<1x2x128xf32> to vector<6x2x128xf32>
    %16 = arith.mulf %11, %15 : vector<6x2x128xf32>
    %17 = tpu.iota {dimensions = array<i32: 0>} : vector<6x2x128xi32>
    %18 = vector.shape_cast %6 : vector<2x128xi32> to vector<1x2x128xi32>
    %19 = vector.broadcast %18 : vector<1x2x128xi32> to vector<6x2x128xi32>
    %20 = arith.cmpi eq, %17, %19 : vector<6x2x128xi32>
    %cst_9 = arith.constant 0.000000e+00 : f32
    %21 = vector.broadcast %cst_9 : f32 to vector<6x2x128xf32>
    %22 = arith.select %20, %16, %21 : vector<6x2x128xi1>, vector<6x2x128xf32>
    %cst_10 = arith.constant dense<0.000000e+00> : vector<2x128xf32>
    %23 = vector.multi_reduction <add>, %22, %cst_10 [0] : vector<6x2x128xf32> to vector<2x128xf32>
    %cst_11 = arith.constant 9.99999997E-7 : f32
    %cst_12 = arith.constant 0.999998986 : f32
    %24 = vector.broadcast %cst_11 : f32 to vector<2x128xf32>
    %25 = arith.maximumf %24, %23 : vector<2x128xf32>
    %26 = vector.broadcast %cst_12 : f32 to vector<2x128xf32>
    %27 = arith.minimumf %26, %25 : vector<2x128xf32>
    %cst_13 = arith.constant 1.000000e+00 : f32
    %28 = vector.broadcast %cst_13 : f32 to vector<2x128xf32>
    %29 = arith.subf %28, %27 : vector<2x128xf32>
    %cst_14 = arith.constant 2.500000e-01 : f32
    %30 = vector.broadcast %cst_14 : f32 to vector<2x128xf32>
    %31 = arith.mulf %30, %29 : vector<2x128xf32>
    %32 = arith.mulf %31, %29 : vector<2x128xf32>
    %33 = math.log %27 : vector<2x128xf32>
    %cst_15 = arith.constant 0.000000e+00 : f32
    %34 = vector.broadcast %cst_15 : f32 to vector<2x128xf32>
    %35 = arith.subf %34, %33 : vector<2x128xf32>
    %36 = arith.mulf %32, %35 : vector<2x128xf32>
    %37 = arith.extui %20 : vector<6x2x128xi1> to vector<6x2x128xi32>
    %38 = arith.sitofp %37 : vector<6x2x128xi32> to vector<6x2x128xf32>
    %cst_16 = arith.constant dense<0.000000e+00> : vector<6x128xf32>
    %39 = vector.multi_reduction <add>, %38, %cst_16 [1] : vector<6x2x128xf32> to vector<6x128xf32>
    %c0_17 = arith.constant 0 : index
    %c0_18 = arith.constant 0 : index
    %c0_19 = arith.constant 0 : index
    %40 = vector.load %arg4[%c0_17, %c0_18, %c0_19] : memref<1x6x128xf32, #tpu.memory_space<vmem>>, vector<1x6x128xf32>
    %cst_20 = arith.constant dense<0.000000e+00> : vector<6x128xf32>
    %41 = vector.multi_reduction <add>, %22, %cst_20 [1] : vector<6x2x128xf32> to vector<6x128xf32>
    %42 = vector.shape_cast %41 : vector<6x128xf32> to vector<1x6x128xf32>
    %43 = arith.addf %40, %42 : vector<1x6x128xf32>
    %c0_21 = arith.constant 0 : index
    %c0_22 = arith.constant 0 : index
    %c0_23 = arith.constant 0 : index
    %44 = vector.load %arg4[%c0_21, %c0_22, %c0_23] : memref<1x6x128xf32, #tpu.memory_space<vmem>>, vector<1x6x128xf32>
    tpu.vector_store %arg4[%c0_21, %c0_22, %c0_23], %43 {strides = array<i32>} : memref<1x6x128xf32, #tpu.memory_space<vmem>>, vector<1x6x128xf32>,
    %c0_24 = arith.constant 0 : index
    %c0_25 = arith.constant 0 : index
    %c0_26 = arith.constant 0 : index
    %45 = vector.load %arg5[%c0_24, %c0_25, %c0_26] : memref<1x6x128xf32, #tpu.memory_space<vmem>>, vector<1x6x128xf32>
    %cst_27 = arith.constant dense<0.000000e+00> : vector<6x128xf32>
    %46 = vector.multi_reduction <add>, %16, %cst_27 [1] : vector<6x2x128xf32> to vector<6x128xf32>
    %47 = arith.addf %46, %39 : vector<6x128xf32>
    %48 = vector.shape_cast %47 : vector<6x128xf32> to vector<1x6x128xf32>
    %49 = arith.addf %45, %48 : vector<1x6x128xf32>
    %c0_28 = arith.constant 0 : index
    %c0_29 = arith.constant 0 : index
    %c0_30 = arith.constant 0 : index
    %50 = vector.load %arg5[%c0_28, %c0_29, %c0_30] : memref<1x6x128xf32, #tpu.memory_space<vmem>>, vector<1x6x128xf32>
    tpu.vector_store %arg5[%c0_28, %c0_29, %c0_30], %49 {strides = array<i32>} : memref<1x6x128xf32, #tpu.memory_space<vmem>>, vector<1x6x128xf32>,
    %c0_31 = arith.constant 0 : index
    %c0_32 = arith.constant 0 : index
    %c0_33 = arith.constant 0 : index
    %51 = vector.load %arg6[%c0_31, %c0_32, %c0_33] : memref<1x1x128xf32, #tpu.memory_space<vmem>>, vector<1x1x128xf32>
    %cst_34 = arith.constant dense<0.000000e+00> : vector<128xf32>
    %52 = vector.multi_reduction <add>, %36, %cst_34 [0] : vector<2x128xf32> to vector<128xf32>
    %53 = vector.shape_cast %52 : vector<128xf32> to vector<1x128xf32>
    %54 = vector.shape_cast %53 : vector<1x128xf32> to vector<1x1x128xf32>
    %55 = arith.addf %51, %54 : vector<1x1x128xf32>
    %c0_35 = arith.constant 0 : index
    %c0_36 = arith.constant 0 : index
    %c0_37 = arith.constant 0 : index
    %56 = vector.load %arg6[%c0_35, %c0_36, %c0_37] : memref<1x1x128xf32, #tpu.memory_space<vmem>>, vector<1x1x128xf32>
    tpu.vector_store %arg6[%c0_35, %c0_36, %c0_37], %55 {strides = array<i32>} : memref<1x1x128xf32, #tpu.memory_space<vmem>>, vector<1x1x128xf32>,
    return
  }
  func.func @transform_0(%arg0: i32, %arg1: i32) -> (i32, i32, i32, i32) {
    %c0_i32 = arith.constant 0 : i32
    %c0_i32_0 = arith.constant 0 : i32
    %c0_i32_1 = arith.constant 0 : i32
    return %arg0, %c0_i32, %arg1, %c0_i32_0 : i32, i32, i32, i32
  }
  func.func @transform_1(%arg0: i32, %arg1: i32) -> (i32, i32, i32, i32) {
    %c0_i32 = arith.constant 0 : i32
    %c0_i32_0 = arith.constant 0 : i32
    %c0_i32_1 = arith.constant 0 : i32
    return %arg0, %c0_i32, %arg1, %c0_i32_0 : i32, i32, i32, i32
  }
  func.func @transform_2(%arg0: i32, %arg1: i32) -> (i32, i32, i32) {
    %c0_i32 = arith.constant 0 : i32
    %c0_i32_0 = arith.constant 0 : i32
    %c0_i32_1 = arith.constant 0 : i32
    return %arg0, %c0_i32, %c0_i32_0 : i32, i32, i32
  }
  func.func @transform_3(%arg0: i32, %arg1: i32) -> (i32, i32, i32) {
    %c0_i32 = arith.constant 0 : i32
    %c0_i32_0 = arith.constant 0 : i32
    %c0_i32_1 = arith.constant 0 : i32
    return %arg0, %c0_i32, %c0_i32_0 : i32, i32, i32
  }
  func.func @transform_4(%arg0: i32, %arg1: i32) -> (i32, i32, i32) {
    %c0_i32 = arith.constant 0 : i32
    %c0_i32_0 = arith.constant 0 : i32
    %c0_i32_1 = arith.constant 0 : i32
    return %arg0, %c0_i32, %c0_i32_0 : i32, i32, i32
  }
}

</mosaic_0001>

<llo_original>
// kernel: tpu_custom_call.1
$region0: #{tpu_custom_call.1}
  #allocation0 [shape = 'u32[]', space=smem, size = 0x4, offset = 0x4, fixed_abs, tag = 'smem constant byte address 0x4 - core index']
  #allocation1 [shape = 'u32[144,128]{1,0:T(1,128)}', space=vmem, size = 0x12000, scoped, tag = 'internal scratch']
  %s0 = inlined_call_operand.hbm [shape: f32[2,6,2,128], index: 0, kind: input, shape index: {}]
  %s1 = inlined_call_operand.hbm [shape: s32[2,1,2,128], index: 1, kind: input, shape index: {}]
  %s2 = inlined_call_operand.vmem [shape: f32[2,6,128], index: 2, kind: output, shape index: {0}]
  %s3 = inlined_call_operand.vmem [shape: f32[2,6,128], index: 3, kind: output, shape index: {1}]
  %s4 = inlined_call_operand.hbm [shape: f32[2,1,128], index: 4, kind: output, shape index: {2}]
  %5 = xla_tuple %s2, %s3, %s4
  %s6 = sld [smem:[#allocation0]]
  $region69: #{tpu_custom_call.1} parent=0
    _
  %s8 = ssub.s32 1, %s6
  %s9 = scalar_select 0, %s8, %s6
  $region1: #{tpu_custom_call.1} parent=0
    #allocation2 [shape = 'u8[12288]{0}', space=vmem, size = 0x3000, scoped, tag = 'input window, operand 0']
    #allocation3 [shape = 's32[2]{0}', space=sflag, size = 0x8, scoped, tag = 'scoped memory for tpu_custom_call.1']
    #allocation4 [shape = 's32[2]{0}', space=sflag, size = 0x8, scoped, tag = 'scoped memory for tpu_custom_call.1']
    #allocation5 [shape = 'u8[2048]{0}', space=vmem, size = 0x800, scoped, tag = 'input window, operand 1']
    #allocation6 [shape = 's32[2]{0}', space=sflag, size = 0x8, scoped, tag = 'scoped memory for tpu_custom_call.1']
    #allocation7 [shape = 'u8[1024]{0}', space=vmem, size = 0x400, scoped, tag = 'output window, operand 2']
    %10 = vsyncpa [#allocation3], 0
    %s11 = scalar_lea.sflag [#allocation3], 1
    %12 = vsyncpa %s11, 0
    %13 = vsyncpa [#allocation6], 0
    %s14 = scalar_lea.sflag [#allocation6], 1
    %15 = vsyncpa %s14, 0
    %16 = vsyncpa [#allocation4], 0
    %s17 = scalar_lea.sflag [#allocation4], 1
    %18 = vsyncpa %s17, 0
    loop: start=0, step=1, limit=4
    $region2: #{tpu_custom_call.1} parent=1 // loop_pre_header
      _
    $region3: #{tpu_custom_call.1} parent=1 // loop_header
      %s20 = sphi 0, %s24
      %p21 = scmp.ge.s32.totalorder %s20, 4
      %s27 = sphi 0, %s39
      %s28 = sphi 0, %s35
      %s29 = sphi 0, %s27
      %s30 = sphi 0, %s28
      %s31 = sphi 0, %s29
      %s32 = sphi 0, %s30
      %s44 = sphi 0, %s46
      %s47 = sphi 0, %s44
      %s48 = sphi 0, %s47
      %s64 = sphi 0, %s48
      %s72 = sphi 0, %s74
      %s75 = sphi 0, %s72
      %s76 = sphi 0, %s75
      %s92 = sphi 0, %s76
      %s98 = sphi 0, %s100
      %s101 = sphi 0, %s98
      %s102 = sphi 0, %s101
      %s118 = sphi 0, %s102
      %s124 = sphi 0, %s126
      %s127 = sphi 0, %s124
      %s128 = sphi 0, %s127
      %s144 = sphi 0, %s128
      %s150 = sphi 0, %s152
      %s153 = sphi 0, %s150
      %s154 = sphi 0, %s153
      %s170 = sphi 0, %s154
    $region4: #{tpu_custom_call.1} parent=1 // loop_header_branch
      %23 = sbr.rel (%p21) target = $region8
    $region5: #{tpu_custom_call.1} parent=1 // loop_body
      %s25 = ssub.s32 %s20, 1
      %s26 = ssub.s32 %s20, 2
      %s33 = sadd.s32 1, %s28
      %p34 = scmp.ge.s32.totalorder %s33, 1
      %s35 = scalar_select %p34, 0, %s33
      %s36 = sadd.s32 1, %s27
      %s37 = scalar_select %p34, %s36, %s27
      %p38 = scmp.ge.s32.totalorder %s37, 2
      %s39 = scalar_select %p38, 0, %s37
      %s40 = ssub.s32 %s27, %s39
      %s41 = ssub.s32 %s28, %s35
      %s42 = sor.u32 %s40, %s41
      %p43 = scmp.eq.s32.totalorder %s42, 0
      %s45 = sadd.s32 %s44, 1
      %s46 = scalar_select %p43, %s44, %s45
      %p49 = pneg %p43
      %p50 = scmp.eq.s32.totalorder %s20, 1
      %p51 = por %p49, %p50
      %p52 = scmp.ne.s32.totalorder %s44, %s47
      %p53 = scmp.eq.s32.totalorder %s20, 0
      %p54 = por %p52, %p53
      %p55 = scmp.ne.s32.totalorder %s44, %s47
      %p56 = scmp.eq.s32.totalorder %s25, 1
      %p57 = por %p55, %p56
      %p58 = scmp.ne.s32.totalorder %s47, %s48
      %p59 = scmp.eq.s32.totalorder %s25, 0
      %p60 = por %p58, %p59
      %p61 = scmp.ne.s32.totalorder %s47, %s48
      %p62 = scmp.eq.s32.totalorder %s26, 1
      %p63 = por %p61, %p62
      %p65 = scmp.ne.s32.totalorder %s48, %s64
      %p66 = scmp.eq.s32.totalorder %s26, 0
      %p67 = por %p65, %p66
      %s68 = ssub.s32 %s27, %s39
      %s69 = ssub.s32 %s28, %s35
      %s70 = sor.u32 %s68, %s69
      %p71 = scmp.eq.s32.totalorder %s70, 0
      %s73 = sadd.s32 %s72, 1
      %s74 = scalar_select %p71, %s72, %s73
      %p77 = pneg %p71
      %p78 = scmp.eq.s32.totalorder %s20, 1
      %p79 = por %p77, %p78
      %p80 = scmp.ne.s32.totalorder %s72, %s75
      %p81 = scmp.eq.s32.totalorder %s20, 0
      %p82 = por %p80, %p81
      %p83 = scmp.ne.s32.totalorder %s72, %s75
      %p84 = scmp.eq.s32.totalorder %s25, 1
      %p85 = por %p83, %p84
      %p86 = scmp.ne.s32.totalorder %s75, %s76
      %p87 = scmp.eq.s32.totalorder %s25, 0
      %p88 = por %p86, %p87
      %p89 = scmp.ne.s32.totalorder %s75, %s76
      %p90 = scmp.eq.s32.totalorder %s26, 1
      %p91 = por %p89, %p90
      %p93 = scmp.ne.s32.totalorder %s76, %s92
      %p94 = scmp.eq.s32.totalorder %s26, 0
      %p95 = por %p93, %p94
      %s96 = ssub.s32 %s27, %s39
      %p97 = scmp.eq.s32.totalorder %s96, 0
      %s99 = sadd.s32 %s98, 1
      %s100 = scalar_select %p97, %s98, %s99
      %p103 = pneg %p97
      %p104 = scmp.eq.s32.totalorder %s20, 1
      %p105 = por %p103, %p104
      %p106 = scmp.ne.s32.totalorder %s98, %s101
      %p107 = scmp.eq.s32.totalorder %s20, 0
      %p108 = por %p106, %p107
      %p109 = scmp.ne.s32.totalorder %s98, %s101
      %p110 = scmp.eq.s32.totalorder %s25, 1
      %p111 = por %p109, %p110
      %p112 = scmp.ne.s32.totalorder %s101, %s102
      %p113 = scmp.eq.s32.totalorder %s25, 0
      %p114 = por %p112, %p113
      %p115 = scmp.ne.s32.totalorder %s101, %s102
      %p116 = scmp.eq.s32.totalorder %s26, 1
      %p117 = por %p115, %p116
      %p119 = scmp.ne.s32.totalorder %s102, %s118
      %p120 = scmp.eq.s32.totalorder %s26, 0
      %p121 = por %p119, %p120
      %s122 = ssub.s32 %s27, %s39
      %p123 = scmp.eq.s32.totalorder %s122, 0
      %s125 = sadd.s32 %s124, 1
      %s126 = scalar_select %p123, %s124, %s125
      %p129 = pneg %p123
      %p130 = scmp.eq.s32.totalorder %s20, 1
      %p131 = por %p129, %p130
      %p132 = scmp.ne.s32.totalorder %s124, %s127
      %p133 = scmp.eq.s32.totalorder %s20, 0
      %p134 = por %p132, %p133
      %p135 = scmp.ne.s32.totalorder %s124, %s127
      %p136 = scmp.eq.s32.totalorder %s25, 1
      %p137 = por %p135, %p136
      %p138 = scmp.ne.s32.totalorder %s127, %s128
      %p139 = scmp.eq.s32.totalorder %s25, 0
      %p140 = por %p138, %p139
      %p141 = scmp.ne.s32.totalorder %s127, %s128
      %p142 = scmp.eq.s32.totalorder %s26, 1
      %p143 = por %p141, %p142
      %p145 = scmp.ne.s32.totalorder %s128, %s144
      %p146 = scmp.eq.s32.totalorder %s26, 0
      %p147 = por %p145, %p146
      %s148 = ssub.s32 %s27, %s39
      %p149 = scmp.eq.s32.totalorder %s148, 0
      %s151 = sadd.s32 %s150, 1
      %s152 = scalar_select %p149, %s150, %s151
      %p155 = pneg %p149
      %p156 = scmp.eq.s32.totalorder %s20, 1
      %p157 = por %p155, %p156
      %p158 = scmp.ne.s32.totalorder %s150, %s153
      %p159 = scmp.eq.s32.totalorder %s20, 0
      %p160 = por %p158, %p159
      %p161 = scmp.ne.s32.totalorder %s150, %s153
      %p162 = scmp.eq.s32.totalorder %s25, 1
      %p163 = por %p161, %p162
      %p164 = scmp.ne.s32.totalorder %s153, %s154
      %p165 = scmp.eq.s32.totalorder %s25, 0
      %p166 = por %p164, %p165
      %p167 = scmp.ne.s32.totalorder %s153, %s154
      %p168 = scmp.eq.s32.totalorder %s26, 1
      %p169 = por %p167, %p168
      %p171 = scmp.ne.s32.totalorder %s154, %s170
      %p172 = scmp.eq.s32.totalorder %s26, 0
      %p173 = por %p171, %p172
      %p174 = scmp.le.s32.totalorder 1, %s20
      %p175 = scmp.lt.s32.totalorder %s20, 3
      %p176 = pnand %p174, %p175
      %p177 = pneg %p176
      // Predicated region
      $region9: #{tpu_custom_call.1} parent=5 // pred_check
        _
      $region10: #{tpu_custom_call.1} parent=5 // pred_check_branch
        %179 = sbr.rel (%p176) target = $region12
      $region11: #{tpu_custom_call.1} parent=5 // pred_region
        %s180 = ssub.s32 %s20, 1
      $region12: #{tpu_custom_call.1} parent=5 // pred_fallthru
        _
      %p181 = scmp.lt.s32.totalorder %s20, 2
      // Predicated region
      $region13: #{tpu_custom_call.1} parent=5 // pred_check
        %p182 = pneg %p181
      $region14: #{tpu_custom_call.1} parent=5 // pred_check_branch
        %184 = sbr.rel (%p182) target = $region16
      $region15: #{tpu_custom_call.1} parent=5 // pred_region
        // Predicated region
        $region17: #{tpu_custom_call.1} parent=15 // pred_check
          %p185 = pneg %p54
        $region18: #{tpu_custom_call.1} parent=15 // pred_check_branch
          %187 = sbr.rel (%p185) target = $region20
        $region19: #{tpu_custom_call.1} parent=15 // pred_region
          %s188 = sand.u32 %s44, 1
          %s189 = scalar_lea.sflag [#allocation3], %s188
          %s190 = sand.u32 %s44, 1
          %s191 = smul.addr %s190, 12
          %s192 = scalar_lea.vmem [#allocation2], %s191
          %s194 = ssub.s32 192, 192
          %195 = vsyncadd %s189, %s194
          %s196 = smul.addr %s27, 6
          %s197 = sadd.s32 %s28, %s196
          %s198 = smul.addr %s197, 32
          %s199 = scalar_lea.hbm %s0, %s198
          %s200 = sshll.u32 %s192, 4
          %s201 = int_to_ptr.vmem [resolvable:$true] %s200
          %206 = dma.hbm_to_vmem [thread:$0]  %s199, 192, %s201, %s189, 32, 32, 2
        $region20: #{tpu_custom_call.1} parent=15 // pred_fallthru
          _
        // Predicated region
        $region21: #{tpu_custom_call.1} parent=15 // pred_check
          %p207 = pneg %p82
        $region22: #{tpu_custom_call.1} parent=15 // pred_check_branch
          %209 = sbr.rel (%p207) target = $region24
        $region23: #{tpu_custom_call.1} parent=15 // pred_region
          %s210 = sand.u32 %s72, 1
          %s211 = scalar_lea.sflag [#allocation6], %s210
          %s212 = sand.u32 %s72, 1
          %s213 = smul.addr %s212, 2
          %s214 = scalar_lea.vmem [#allocation5], %s213
          %s216 = ssub.s32 32, 32
          %217 = vsyncadd %s211, %s216
          %s218 = sadd.s32 %s28, %s27
          %s219 = smul.addr %s218, 32
          %s220 = scalar_lea.hbm %s1, %s219
          %s222 = sshll.u32 %s214, 4
          %s223 = int_to_ptr.vmem [resolvable:$true] %s222
          %225 = dma.hbm_to_vmem [thread:$0]  %s220, 32, %s223, %s211
        $region24: #{tpu_custom_call.1} parent=15 // pred_fallthru
          _
      $region16: #{tpu_custom_call.1} parent=5 // pred_fallthru
        _
      %p226 = scmp.le.s32.totalorder 1, %s20
      %p227 = scmp.lt.s32.totalorder %s20, 3
      %p228 = pnand %p226, %p227
      %p229 = pneg %p228
      // Predicated region
      $region25: #{tpu_custom_call.1} parent=5 // pred_check
        _
      $region26: #{tpu_custom_call.1} parent=5 // pred_check_branch
        %231 = sbr.rel (%p228) target = $region28
      $region27: #{tpu_custom_call.1} parent=5 // pred_region
        %s232 = ssub.s32 %s20, 1
        %s233 = sand.u32 %s47, 1
        %s234 = scalar_lea.sflag [#allocation3], %s233
        %s235 = sand.u32 %s47, 1
        %s236 = smul.addr %s235, 12
        %s237 = scalar_lea.vmem [#allocation2], %s236
        // Predicated region
        $region29: #{tpu_custom_call.1} parent=27 // pred_check
          %p238 = pneg %p60
        $region30: #{tpu_custom_call.1} parent=27 // pred_check_branch
          %240 = sbr.rel (%p238) target = $region32
        $region31: #{tpu_custom_call.1} parent=27 // pred_region
          %241 = dma.done %s234, 192
        $region32: #{tpu_custom_call.1} parent=27 // pred_fallthru
          _
        %s242 = sand.u32 %s75, 1
        %s243 = scalar_lea.sflag [#allocation6], %s242
        %s244 = sand.u32 %s75, 1
        %s245 = smul.addr %s244, 2
        %s246 = scalar_lea.vmem [#allocation5], %s245
        // Predicated region
        $region33: #{tpu_custom_call.1} parent=27 // pred_check
          %p247 = pneg %p88
        $region34: #{tpu_custom_call.1} parent=27 // pred_check_branch
          %249 = sbr.rel (%p247) target = $region36
        $region35: #{tpu_custom_call.1} parent=27 // pred_region
          %250 = dma.done %s243, 32
        $region36: #{tpu_custom_call.1} parent=27 // pred_fallthru
          _
        %s251 = sand.u32 %s47, 1
        %s252 = scalar_lea.sflag [#allocation3], %s251
        %s253 = sand.u32 %s47, 1
        %s254 = smul.addr %s253, 12
        %s255 = scalar_lea.vmem [#allocation2], %s254
        %p256 = pneg %p60
        %p257 = pneg %p57
        %s258 = sand.u32 %s75, 1
        %s259 = scalar_lea.sflag [#allocation6], %s258
        %s260 = sand.u32 %s75, 1
        %s261 = smul.addr %s260, 2
        %s262 = scalar_lea.vmem [#allocation5], %s261
        %p263 = pneg %p88
        %p264 = pneg %p85
        %p265 = pneg %p114
        %p266 = pneg %p111
        %p267 = scmp.lt.s32.totalorder %s29, 1
        %s268 = scalar_select %p267, %s29, 1
        %s269 = smul.addr %s268, 8
        %s270 = scalar_lea.vmem %s2, %s269
        %p271 = pneg %p140
        %p272 = pneg %p137
        %p273 = scmp.lt.s32.totalorder %s29, 1
        %s274 = scalar_select %p273, %s29, 1
        %s275 = smul.addr %s274, 8
        %s276 = scalar_lea.vmem %s3, %s275
        %p277 = pneg %p166
        %p278 = pneg %p163
        %s279 = sand.u32 %s153, 1
        %s280 = scalar_lea.sflag [#allocation4], %s279
        %s281 = sand.u32 %s153, 1
        %s282 = scalar_lea.vmem [#allocation7], %s281
        %p283 = scmp.lt.s32.totalorder %s29, 1
        %s284 = scalar_select %p283, %s29, 1
        %s285 = smul.addr %s284, 8
        %s286 = scalar_lea.vmem %s2, %s285
        %p287 = scmp.lt.s32.totalorder %s29, 1
        %s288 = scalar_select %p287, %s29, 1
        %s289 = smul.addr %s288, 8
        %s290 = scalar_lea.vmem %s3, %s289
        %p291 = scmp.eq.s32.totalorder %s30, 0
        // Predicated region
        $region37: #{tpu_custom_call.1} parent=27 // pred_check
          %p292 = pneg %p291
        $region38: #{tpu_custom_call.1} parent=27 // pred_check_branch
          %294 = sbr.rel (%p292) target = $region40
        $region39: #{tpu_custom_call.1} parent=27 // pred_region
          %295 = vst [vmem:[%s286] sm:$0x3f] 0.0
          %296 = vst [vmem:[%s290] sm:$0x3f] 0.0
          %297 = vst [vmem:[%s282] sm:$0x1] 0.0
        $region40: #{tpu_custom_call.1} parent=27 // pred_fallthru
          _
        %v298 = vld [vmem:[%s237] sm:$0x3]
        %v299 = vld [vmem:[%s237 + $0x2] sm:$0x3]
        %v300 = vld [vmem:[%s237 + $0x4] sm:$0x3]
        %v301 = vld [vmem:[%s237 + $0x6] sm:$0x3]
        %v302 = vld [vmem:[%s237 + $0x8] sm:$0x3]
        %v303 = vld [vmem:[%s237 + $0xa] sm:$0x3]
        %v304 = vld [vmem:[%s246] sm:$0x3]
        %vm305 = vcmask 1041408
        %v306 = vsel %vm305, %v298, -inf
        %v307 = vsel %vm305, %v299, -inf
        %v308 = vsel %vm305, %v300, -inf
        %v309 = vsel %vm305, %v301, -inf
        %v310 = vsel %vm305, %v302, -inf
        %v311 = vmax.f32 %v306, %v310
        %v312 = vsel %vm305, %v303, -inf
        %v313 = vmax.f32 %v307, %v312
        %v314 = vmax.f32 %v311, %v313
        %v315 = vmax.f32 %v308, %v309
        %v316 = vmax.f32 %v314, %v315
        %v317 = vsub.f32 %v298, %v316
        %v318 = vsub.f32 %v299, %v316
        %v319 = vsub.f32 %v300, %v316
        %v320 = vsub.f32 %v301, %v316
        %v321 = vsub.f32 %v302, %v316
        %v322 = vsub.f32 %v303, %v316
        %v323 = vmul.f32 %v317, 1.442695
        %v324 = vpow.pop %v323
        %v325 = vmul.f32 %v318, 1.442695
        %v326 = vpow.pop %v325
        %v327 = vmul.f32 %v319, 1.442695
        %v328 = vpow.pop %v327
        %v329 = vmul.f32 %v320, 1.442695
        %v330 = vpow.pop %v329
        %v331 = vmul.f32 %v321, 1.442695
        %v332 = vpow.pop %v331
        %v333 = vmul.f32 %v322, 1.442695
        %v334 = vpow.pop %v333
        %v335 = vsel %vm305, %v324, 0.0
        %v336 = vsel %vm305, %v326, 0.0
        %v337 = vadd.f32 %v335, %v336
        %v338 = vsel %vm305, %v328, 0.0
        %v339 = vadd.f32 %v337, %v338
        %v340 = vsel %vm305, %v330, 0.0
        %v341 = vadd.f32 %v339, %v340
        %v342 = vsel %vm305, %v332, 0.0
        %v343 = vadd.f32 %v341, %v342
        %v344 = vsel %vm305, %v334, 0.0
        %v345 = vadd.f32 %v343, %v344
        %v346 = vrcp.pop %v345
        %v347 = vmul.f32 %v324, %v346
        %v348 = vmul.f32 %v326, %v346
        %v349 = vmul.f32 %v328, %v346
        %v350 = vmul.f32 %v330, %v346
        %v351 = vmul.f32 %v332, %v346
        %v352 = vmul.f32 %v334, %v346
        %vm353 = vcmp.eq.s32.totalorder %v304, 0
        %vm354 = vcmp.eq.s32.totalorder %v304, 1
        %vm355 = vcmp.eq.s32.totalorder %v304, 2
        %vm356 = vcmp.eq.s32.totalorder %v304, 3
        %vm357 = vcmp.eq.s32.totalorder %v304, 4
        %vm358 = vcmp.eq.s32.totalorder %v304, 5
        %v359 = vsel %vm353, %v347, 0.0
        %v360 = vsel %vm354, %v348, 0.0
        %v361 = vsel %vm355, %v349, 0.0
        %v362 = vsel %vm356, %v350, 0.0
        %v363 = vsel %vm357, %v351, 0.0
        %v364 = vsel %vm358, %v352, 0.0
        %v365 = vsel %vm305, %v359, 0.0
        %v366 = vsel %vm305, %v360, 0.0
        %v367 = vadd.f32 %v365, %v366
        %v368 = vsel %vm305, %v361, 0.0
        %v369 = vadd.f32 %v367, %v368
        %v370 = vsel %vm305, %v362, 0.0
        %v371 = vadd.f32 %v369, %v370
        %v372 = vsel %vm305, %v363, 0.0
        %v373 = vadd.f32 %v371, %v372
        %v374 = vsel %vm305, %v364, 0.0
        %v375 = vadd.f32 %v373, %v374
        %v376 = vmax.f32 %v375, 1e-06
        %v377 = vmin.f32 %v376, 0.999999
        %v378 = vsub.f32 1.0, %v377
        %v379 = vmul.f32 %v378, 0.25
        %v380 = vmul.f32 %v379, %v378
        %v381 = vlog2.pop %v377
        %v382 = vmul.f32 %v381, 0.6931472
        %v383 = vsub.f32 0.0, %v382
        %v384 = vmul.f32 %v380, %v383
        %v385 = vsel %vm353, 1, 0
        %v386 = vsel %vm354, 1, 0
        %v387 = vsel %vm355, 1, 0
        %v388 = vsel %vm356, 1, 0
        %v389 = vsel %vm357, 1, 0
        %v390 = vsel %vm358, 1, 0
        %v391 = vcvt.s32.f32 %v385
        %v392 = vcvt.s32.f32 %v386
        %v393 = vcvt.s32.f32 %v387
        %v394 = vcvt.s32.f32 %v388
        %v395 = vcvt.s32.f32 %v389
        %v396 = vcvt.s32.f32 %v390
        %v397 = vsel %vm305, %v391, 0.0
        %v398 = vrot.slane %v397, 4
        %v399 = vadd.f32 %v397, %v398
        %v400 = vrot.slane %v399, 2
        %v401 = vadd.f32 %v399, %v400
        %v402 = vrot.slane %v401, 1
        %v403 = vadd.f32 %v401, %v402
        %v404 = vsel %vm305, %v392, 0.0
        %v405 = vrot.slane %v404, 4
        %v406 = vadd.f32 %v404, %v405
        %v407 = vrot.slane %v406, 2
        %v408 = vadd.f32 %v406, %v407
        %v409 = vrot.slane %v408, 1
        %v410 = vadd.f32 %v408, %v409
        %v411 = vsel %vm305, %v393, 0.0
        %v412 = vrot.slane %v411, 4
        %v413 = vadd.f32 %v411, %v412
        %v414 = vrot.slane %v413, 2
        %v415 = vadd.f32 %v413, %v414
        %v416 = vrot.slane %v415, 1
        %v417 = vadd.f32 %v415, %v416
        %v418 = vsel %vm305, %v394, 0.0
        %v419 = vrot.slane %v418, 4
        %v420 = vadd.f32 %v418, %v419
        %v421 = vrot.slane %v420, 2
        %v422 = vadd.f32 %v420, %v421
        %v423 = vrot.slane %v422, 1
        %v424 = vadd.f32 %v422, %v423
        %v425 = vsel %vm305, %v395, 0.0
        %v426 = vrot.slane %v425, 4
        %v427 = vadd.f32 %v425, %v426
        %v428 = vrot.slane %v427, 2
        %v429 = vadd.f32 %v427, %v428
        %v430 = vrot.slane %v429, 1
        %v431 = vadd.f32 %v429, %v430
        %v432 = vsel %vm305, %v396, 0.0
        %v433 = vrot.slane %v432, 4
        %v434 = vadd.f32 %v432, %v433
        %v435 = vrot.slane %v434, 2
        %v436 = vadd.f32 %v434, %v435
        %v437 = vrot.slane %v436, 1
        %v438 = vadd.f32 %v436, %v437
        %v439 = vld [vmem:[%s286] sm:$0x3f]
        %v440 = vrot.slane %v365, 4
        %v441 = vadd.f32 %v365, %v440
        %v442 = vrot.slane %v441, 2
        %v443 = vadd.f32 %v441, %v442
        %v444 = vrot.slane %v443, 1
        %v445 = vadd.f32 %v443, %v444
        %v446 = vrot.slane %v366, 4
        %v447 = vadd.f32 %v366, %v446
        %v448 = vrot.slane %v447, 2
        %v449 = vadd.f32 %v447, %v448
        %v450 = vrot.slane %v449, 1
        %v451 = vadd.f32 %v449, %v450
        %v452 = vrot.slane %v368, 4
        %v453 = vadd.f32 %v368, %v452
        %v454 = vrot.slane %v453, 2
        %v455 = vadd.f32 %v453, %v454
        %v456 = vrot.slane %v455, 1
        %v457 = vadd.f32 %v455, %v456
        %v458 = vrot.slane %v370, 4
        %v459 = vadd.f32 %v370, %v458
        %v460 = vrot.slane %v459, 2
        %v461 = vadd.f32 %v459, %v460
        %v462 = vrot.slane %v461, 1
        %v463 = vadd.f32 %v461, %v462
        %v464 = vrot.slane %v372, 4
        %v465 = vadd.f32 %v372, %v464
        %v466 = vrot.slane %v465, 2
        %v467 = vadd.f32 %v465, %v466
        %v468 = vrot.slane %v467, 1
        %v469 = vadd.f32 %v467, %v468
        %v470 = vrot.slane %v374, 4
        %v471 = vadd.f32 %v374, %v470
        %v472 = vrot.slane %v471, 2
        %v473 = vadd.f32 %v471, %v472
        %v474 = vrot.slane %v473, 1
        %v475 = vadd.f32 %v473, %v474
        %vm482 = vcmask 1041409
        %v483 = vsel %vm482, %v451, %v445
        %vm484 = vcmask 1042434
        %v485 = vsel %vm484, %v457, %v483
        %vm486 = vcmask 1043459
        %v487 = vsel %vm486, %v463, %v485
        %vm488 = vcmask 1044484
        %v489 = vsel %vm488, %v469, %v487
        %vm490 = vcmask 1045509
        %v491 = vsel %vm490, %v475, %v489
        %v493 = vadd.f32 %v439, %v491
        %494 = vst [vmem:[%s286] sm:$0x3f] %v493
        %v495 = vld [vmem:[%s290] sm:$0x3f]
        %v496 = vsel %vm305, %v347, 0.0
        %v497 = vrot.slane %v496, 4
        %v498 = vadd.f32 %v496, %v497
        %v499 = vrot.slane %v498, 2
        %v500 = vadd.f32 %v498, %v499
        %v501 = vrot.slane %v500, 1
        %v502 = vadd.f32 %v500, %v501
        %v503 = vsel %vm305, %v348, 0.0
        %v504 = vrot.slane %v503, 4
        %v505 = vadd.f32 %v503, %v504
        %v506 = vrot.slane %v505, 2
        %v507 = vadd.f32 %v505, %v506
        %v508 = vrot.slane %v507, 1
        %v509 = vadd.f32 %v507, %v508
        %v510 = vsel %vm305, %v349, 0.0
        %v511 = vrot.slane %v510, 4
        %v512 = vadd.f32 %v510, %v511
        %v513 = vrot.slane %v512, 2
        %v514 = vadd.f32 %v512, %v513
        %v515 = vrot.slane %v514, 1
        %v516 = vadd.f32 %v514, %v515
        %v517 = vsel %vm305, %v350, 0.0
        %v518 = vrot.slane %v517, 4
        %v519 = vadd.f32 %v517, %v518
        %v520 = vrot.slane %v519, 2
        %v521 = vadd.f32 %v519, %v520
        %v522 = vrot.slane %v521, 1
        %v523 = vadd.f32 %v521, %v522
        %v524 = vsel %vm305, %v351, 0.0
        %v525 = vrot.slane %v524, 4
        %v526 = vadd.f32 %v524, %v525
        %v527 = vrot.slane %v526, 2
        %v528 = vadd.f32 %v526, %v527
        %v529 = vrot.slane %v528, 1
        %v530 = vadd.f32 %v528, %v529
        %v531 = vsel %vm305, %v352, 0.0
        %v532 = vrot.slane %v531, 4
        %v533 = vadd.f32 %v531, %v532
        %v534 = vrot.slane %v533, 2
        %v535 = vadd.f32 %v533, %v534
        %v536 = vrot.slane %v535, 1
        %v537 = vadd.f32 %v535, %v536
        %v538 = vadd.f32 %v502, %v403
        %v539 = vadd.f32 %v509, %v410
        %v540 = vadd.f32 %v516, %v417
        %v541 = vadd.f32 %v523, %v424
        %v542 = vadd.f32 %v530, %v431
        %v543 = vadd.f32 %v537, %v438
        %v550 = vsel %vm482, %v539, %v538
        %v551 = vsel %vm484, %v540, %v550
        %v552 = vsel %vm486, %v541, %v551
        %v553 = vsel %vm488, %v542, %v552
        %v554 = vsel %vm490, %v543, %v553
        %v556 = vadd.f32 %v495, %v554
        %557 = vst [vmem:[%s290] sm:$0x3f] %v556
        %v558 = vld [vmem:[%s282] sm:$0x1]
        %v559 = vsel %vm305, %v384, 0.0
        %v560 = vrot.slane %v559, 4
        %v561 = vadd.f32 %v559, %v560
        %v562 = vrot.slane %v561, 2
        %v563 = vadd.f32 %v561, %v562
        %v564 = vrot.slane %v563, 1
        %v565 = vadd.f32 %v563, %v564
        %v566 = vadd.f32 %v558, %v565
        %567 = vst [vmem:[%s282] sm:$0x1] %v566
        %p568 = scmp.lt.s32.totalorder %s29, 1
        %s569 = scalar_select %p568, %s29, 1
        %s570 = smul.addr %s569, 8
        %s571 = scalar_lea.vmem %s2, %s570
        %p572 = scmp.lt.s32.totalorder %s29, 1
        %s573 = scalar_select %p572, %s29, 1
        %s574 = smul.addr %s573, 8
        %s575 = scalar_lea.vmem %s3, %s574
        %s576 = sand.u32 %s153, 1
        %s577 = scalar_lea.sflag [#allocation4], %s576
        %s578 = sand.u32 %s153, 1
        %s579 = scalar_lea.vmem [#allocation7], %s578
        // Predicated region
        $region41: #{tpu_custom_call.1} parent=27 // pred_check
          %p580 = pneg %p111
        $region42: #{tpu_custom_call.1} parent=27 // pred_check_branch
          %582 = sbr.rel (%p580) target = $region44
        $region43: #{tpu_custom_call.1} parent=27 // pred_region
          _
        $region44: #{tpu_custom_call.1} parent=27 // pred_fallthru
          _
        // Predicated region
        $region45: #{tpu_custom_call.1} parent=27 // pred_check
          %p583 = pneg %p137
        $region46: #{tpu_custom_call.1} parent=27 // pred_check_branch
          %585 = sbr.rel (%p583) target = $region48
        $region47: #{tpu_custom_call.1} parent=27 // pred_region
          _
        $region48: #{tpu_custom_call.1} parent=27 // pred_fallthru
          _
        // Predicated region
        $region49: #{tpu_custom_call.1} parent=27 // pred_check
          %p586 = pneg %p163
        $region50: #{tpu_custom_call.1} parent=27 // pred_check_branch
          %588 = sbr.rel (%p586) target = $region52
        $region51: #{tpu_custom_call.1} parent=27 // pred_region
          %s590 = ssub.s32 16, 16
          %591 = vsyncadd %s577, %s590
          %s592 = smul.addr %s29, 16
          %s593 = scalar_lea.hbm %s4, %s592
          %s595 = sshll.u32 %s579, 4
          %s596 = int_to_ptr.vmem [resolvable:$true] %s595
          %598 = dma.vmem_to_hbm [thread:$0]  %s596, 16, %s593, %s577
        $region52: #{tpu_custom_call.1} parent=27 // pred_fallthru
          _
      $region28: #{tpu_custom_call.1} parent=5 // pred_fallthru
        _
      %p599 = scmp.le.s32.totalorder 2, %s20
      // Predicated region
      $region53: #{tpu_custom_call.1} parent=5 // pred_check
        %p600 = pneg %p599
      $region54: #{tpu_custom_call.1} parent=5 // pred_check_branch
        %602 = sbr.rel (%p600) target = $region56
      $region55: #{tpu_custom_call.1} parent=5 // pred_region
        %s603 = ssub.s32 %s20, 2
        // Predicated region
        $region57: #{tpu_custom_call.1} parent=55 // pred_check
          %p604 = pneg %p117
        $region58: #{tpu_custom_call.1} parent=55 // pred_check_branch
          %606 = sbr.rel (%p604) target = $region60
        $region59: #{tpu_custom_call.1} parent=55 // pred_region
          %p607 = scmp.lt.s32.totalorder %s31, 1
          %s608 = scalar_select %p607, %s31, 1
          %s609 = smul.addr %s608, 8
          %s610 = scalar_lea.vmem %s2, %s609
        $region60: #{tpu_custom_call.1} parent=55 // pred_fallthru
          _
        // Predicated region
        $region61: #{tpu_custom_call.1} parent=55 // pred_check
          %p611 = pneg %p143
        $region62: #{tpu_custom_call.1} parent=55 // pred_check_branch
          %613 = sbr.rel (%p611) target = $region64
        $region63: #{tpu_custom_call.1} parent=55 // pred_region
          %p614 = scmp.lt.s32.totalorder %s31, 1
          %s615 = scalar_select %p614, %s31, 1
          %s616 = smul.addr %s615, 8
          %s617 = scalar_lea.vmem %s3, %s616
        $region64: #{tpu_custom_call.1} parent=55 // pred_fallthru
          _
        // Predicated region
        $region65: #{tpu_custom_call.1} parent=55 // pred_check
          %p618 = pneg %p169
        $region66: #{tpu_custom_call.1} parent=55 // pred_check_branch
          %620 = sbr.rel (%p618) target = $region68
        $region67: #{tpu_custom_call.1} parent=55 // pred_region
          %s621 = sand.u32 %s154, 1
          %s622 = scalar_lea.sflag [#allocation4], %s621
          %s623 = sand.u32 %s154, 1
          %s624 = scalar_lea.vmem [#allocation7], %s623
          %625 = dma.done %s622, 16
        $region68: #{tpu_custom_call.1} parent=55 // pred_fallthru
          _
      $region56: #{tpu_custom_call.1} parent=5 // pred_fallthru
        _
    $region6: #{tpu_custom_call.1} parent=1 // loop_footer
      %s24 = sadd.s32 1, %s20
    $region7: #{tpu_custom_call.1} parent=1 // loop_footer_branch
      %19 = sbr.rel target = $region3
    $region8: #{tpu_custom_call.1} parent=1 // loop_exit
      _
    %626 = vsyncpa [#allocation3], 1
    %s627 = scalar_lea.sflag [#allocation3], 1
    %628 = vsyncpa %s627, 1
    %629 = vsyncpa [#allocation6], 1
    %s630 = scalar_lea.sflag [#allocation6], 1
    %631 = vsyncpa %s630, 1
    %632 = vsyncpa [#allocation4], 1
    %s633 = scalar_lea.sflag [#allocation4], 1
    %634 = vsyncpa %s633, 1

</llo_original>
